<compile_context>
chip_gen: v7x
topology: tpu7x:2x2x1
jax: 0.10.0
libtpu: 0.0.40
codegen_flags: <defaults>
</compile_context>

<pallas_src>
import jax
import jax.numpy as jnp
from jax.experimental import pallas as pl
from jax.experimental.pallas import tpu as pltpu


def residual_pointwise_kernel(x_ref, w_ref, b_ref, o_ref):
    """out[i] = W @ x[i] + b + x[i] for each batch row i of the block.

    x_ref, o_ref: (nb, C, TILE_H) -- channels on sublanes, horizon on lanes.
    w_ref:        (C, C)          -- resident in VMEM (constant index_map).
    b_ref:        (C, 1) float32  -- added in the f32 epilogue.
    """
    w = w_ref[...]                     # activation dtype (bf16 stays bf16 for MXU)
    bias = b_ref[...]                  # f32
    for i in range(x_ref.shape[0]):    # static nb (small), fully unrolled
        x = x_ref[i]                                                   # (C, TILE_H)
        fx = jnp.dot(w, x, preferred_element_type=jnp.float32)         # f32 accum
        # f32 epilogue (bias + residual), single downcast at the store.
        o_ref[i] = (fx + bias + x.astype(jnp.float32)).astype(o_ref.dtype)


def _plan_blocks(B, C, H_pad, itemsize, tile_budget_bytes):
    """Pick (nb, tile_h): bytes-per-step ~tile_budget, >=2 grid steps if possible."""
    # Largest multiple-of-128 divisor of the (padded) horizon under the budget.
    row_bytes = C * itemsize
    max_h = max(128, (tile_budget_bytes // row_bytes) // 128 * 128)
    tile_h = min(H_pad, max_h)
    while H_pad % tile_h != 0:
        tile_h -= 128

    # Whole horizon fits one tile -> pack several batch elements per step so
    # each DMA is one contiguous C*H slab (instead of short strided rows).
    nb = 1
    if tile_h == H_pad:
        max_nb = max(1, tile_budget_bytes // (C * H_pad * itemsize))
        nb = max(d for d in range(1, B + 1) if B % d == 0 and d <= max_nb)

    # Guarantee >= 2 grid steps along a "parallel" axis so both v7x
    # TensorCores get work (harmless no-op on v5e/v6e).
    if (B // nb) * (H_pad // tile_h) < 2:
        if B >= 2:
            nb = max(d for d in range(1, B) if B % d == 0 and B // d >= 2)
        elif H_pad >= 256:
            t = (H_pad // 2) // 128 * 128
            while H_pad % t != 0:
                t -= 128
            tile_h = t
    return nb, tile_h


def residual_forward(x_nch, w, b, *, tile_budget_bytes=4 * 1024 * 1024,
                     donate_input=False):
    """Residual(fn)(x) with fn = pointwise Conv1d(C, C), in NCH layout.

    Args:
      x_nch: (B, C, H) input (PyTorch Conv1d convention).
      w:     (C, C) weight (out_channels x in_channels).
      b:     (C,)   bias.
    Returns:
      (B, C, H), same dtype as x_nch.
    """
    B, C, H = x_nch.shape
    dtype = x_nch.dtype
    itemsize = jnp.dtype(dtype).itemsize

    # Lane-dense horizon: pad ragged / short H to a multiple of 128 so output
    # stores are full-width (unmasked vst) and DMA rows are long; sliced back
    # after the kernel.  The padded columns are dead work but keep lanes full.
    H_pad = H if H % 128 == 0 else ((H + 127) // 128) * 128
    padded = H_pad != H
    x_in = jnp.pad(x_nch, ((0, 0), (0, 0), (0, H_pad - H))) if padded else x_nch

    # MXU operands in the activation dtype; bias stays f32 (epilogue add, tiny).
    w2 = w.astype(dtype)
    b2 = b.astype(jnp.float32).reshape(C, 1)

    nb, tile_h = _plan_blocks(B, C, H_pad, itemsize, tile_budget_bytes)
    grid = (B // nb, H_pad // tile_h)

    # Scoped-VMEM budget: 2x double-buffered x-tile + 2x out-tile + w + b, with
    # headroom; capped at 48 MiB so it is always safe on v7x (64 MiB physical)
    # while still lifting v5e's 16 MiB scoped default when needed.
    tile_bytes = nb * C * tile_h * itemsize
    w_bytes = C * C * jnp.dtype(w2.dtype).itemsize
    need = 4 * tile_bytes + 2 * w_bytes + 2 * C * 4
    vmem_limit = int(min(48 << 20, max(8 << 20, need + (4 << 20))))

    cost = pl.CostEstimate(
        flops=2 * B * C * C * H_pad,
        transcendentals=0,
        bytes_accessed=2 * B * C * H_pad * itemsize + w_bytes + C * 4)

    out = pl.pallas_call(
        residual_pointwise_kernel,
        out_shape=jax.ShapeDtypeStruct((B, C, H_pad), dtype),
        grid=grid,
        in_specs=[
            # x block: nb batch rows, full channels on sublanes, H tile on lanes.
            pl.BlockSpec((nb, C, tile_h), lambda bi, hi: (bi, 0, hi)),
            # Weight / bias: constant index_map -> stay resident in VMEM.
            pl.BlockSpec((C, C), lambda bi, hi: (0, 0)),
            pl.BlockSpec((C, 1), lambda bi, hi: (0, 0)),
        ],
        out_specs=pl.BlockSpec((nb, C, tile_h), lambda bi, hi: (bi, 0, hi)),
        compiler_params=pltpu.CompilerParams(
            dimension_semantics=("parallel", "parallel"),
            vmem_limit_bytes=vmem_limit),
        cost_estimate=cost,
        # Alias x -> out: always safe for the wrapper-owned padded copy; opt-in
        # (donate_input=True) when the caller is happy to donate x.
        input_output_aliases=({0: 0} if (padded or donate_input) else {}),
    )(x_in, w2, b2)

    return out[:, :, :H] if padded else out


def residual_forward_ref(x_nch, w, b):
    """Pure-JAX f32 reference: fn(x) + x, in NCH layout."""
    xf = x_nch.astype(jnp.float32)
    fx = jnp.einsum("oc,bch->boh", w.astype(jnp.float32), xf)
    return fx + b.astype(jnp.float32)[None, :, None] + xf


if __name__ == "__main__":
    key = jax.random.PRNGKey(0)
    kx, kw, kb, kx2, kx3, kw3, kb3 = jax.random.split(key, 7)

    # Case 1: short / ragged horizon (H=16 -> padded to 128 inside the wrapper).
    B, C, H = 2, 8, 16
    x = jax.random.normal(kx, (B, C, H), dtype=jnp.float32)
    bound = 1.0 / float(C) ** 0.5
    w = jax.random.uniform(kw, (C, C), jnp.float32, -bound, bound)
    b = jax.random.uniform(kb, (C,), jnp.float32, -bound, bound)
    ref1 = residual_forward_ref(x, w, b)
    out1 = jax.block_until_ready(residual_forward(x, w, b))
    assert out1.shape == (B, C, H)
    assert jnp.allclose(out1.astype(jnp.float32), ref1, atol=1e-5, rtol=1e-5), \
        "mismatch vs reference (ragged H)"

    # Case 2: lane-aligned horizon, f32, multi-step grid.
    H2 = 256
    x2 = jax.random.normal(kx2, (B, C, H2), dtype=jnp.float32)
    ref2 = residual_forward_ref(x2, w, b)
    out2 = jax.block_until_ready(residual_forward(x2, w, b))
    assert jnp.allclose(out2.astype(jnp.float32), ref2, atol=1e-5, rtol=1e-5), \
        "mismatch vs reference (lane-aligned H)"

    # Case 3: bf16 activations + multi-batch blocks (nb > 1 per grid step).
    B3, C3, H3 = 4, 32, 384
    x3 = jax.random.normal(kx3, (B3, C3, H3), dtype=jnp.bfloat16)
    bound3 = 1.0 / float(C3) ** 0.5
    w3 = jax.random.uniform(kw3, (C3, C3), jnp.float32, -bound3, bound3).astype(jnp.bfloat16)
    b3 = jax.random.uniform(kb3, (C3,), jnp.float32, -bound3, bound3)
    ref3 = residual_forward_ref(x3, w3, b3)
    out3 = jax.block_until_ready(residual_forward(x3, w3, b3))
    assert jnp.allclose(out3.astype(jnp.float32), ref3, atol=3e-2, rtol=3e-2), \
        "mismatch vs reference (bf16, multi-batch block)"

    print("KERNEL_OK")
</pallas_src>

<mosaic_0001>
module attributes {stable_mosaic.version = 11 : i64} {
  func.func @residual_pointwise_kernel(%arg0: i32, %arg1: i32, %arg2: memref<1x8x128xf32, #tpu.memory_space<vmem>>, %arg3: memref<8x8xf32, #tpu.memory_space<vmem>>, %arg4: memref<8x1xf32, #tpu.memory_space<vmem>>, %arg5: memref<1x8x128xf32, #tpu.memory_space<vmem>>) attributes {dimension_semantics = [#tpu.dimension_semantics<parallel>, #tpu.dimension_semantics<parallel>], iteration_bounds = array<i64: 2, 1>, scalar_prefetch = 0 : i64, scratch_operands = 0 : i64, tpu.core_type = #tpu.core_type<tc>, window_params = [{transform_indices = @transform_0, window_bounds = array<i64: 1, 8, 128>}, {pipeline_mode = #tpu.pipeline_mode<synchronous>, transform_indices = @transform_1, window_bounds = array<i64: 8, 8>}, {pipeline_mode = #tpu.pipeline_mode<synchronous>, transform_indices = @transform_2, window_bounds = array<i64: 8, 1>}, {transform_indices = @transform_3, window_bounds = array<i64: 1, 8, 128>}]} {
    %c0 = arith.constant 0 : index
    %c0_0 = arith.constant 0 : index
    %0 = vector.load %arg3[%c0, %c0_0] : memref<8x8xf32, #tpu.memory_space<vmem>>, vector<8x8xf32>
    %c0_1 = arith.constant 0 : index
    %c0_2 = arith.constant 0 : index
    %1 = vector.load %arg4[%c0_1, %c0_2] : memref<8x1xf32, #tpu.memory_space<vmem>>, vector<8x1xf32>
    %c0_3 = arith.constant 0 : index
    %c0_4 = arith.constant 0 : index
    %c0_5 = arith.constant 0 : index
    %2 = vector.load %arg2[%c0_3, %c0_4, %c0_5] : memref<1x8x128xf32, #tpu.memory_space<vmem>>, vector<1x8x128xf32>
    %3 = vector.shape_cast %2 : vector<1x8x128xf32> to vector<8x128xf32>
    %cst = arith.constant dense<0.000000e+00> : vector<8x128xf32>
    %4 = tpu.matmul %0, %3, %cst {dimension_numbers = #tpu.dot_dimension_numbers<[1], [0], [0], [1], [0, 0, 1, 1], [], []>} : vector<8x8xf32>, vector<8x128xf32>, vector<8x128xf32> -> vector<8x128xf32>
    %5 = vector.broadcast %1 : vector<8x1xf32> to vector<8x128xf32>
    %6 = arith.addf %4, %5 : vector<8x128xf32>
    %7 = arith.addf %6, %3 : vector<8x128xf32>
    %c0_6 = arith.constant 0 : index
    %c0_7 = arith.constant 0 : index
    %c0_8 = arith.constant 0 : index
    %8 = vector.load %arg5[%c0_6, %c0_7, %c0_8] : memref<1x8x128xf32, #tpu.memory_space<vmem>>, vector<1x8x128xf32>
    %9 = vector.shape_cast %8 : vector<1x8x128xf32> to vector<8x128xf32>
    %10 = vector.shape_cast %7 : vector<8x128xf32> to vector<1x8x128xf32>
    tpu.vector_store %arg5[%c0_6, %c0_7, %c0_8], %10 {strides = array<i32>} : memref<1x8x128xf32, #tpu.memory_space<vmem>>, vector<1x8x128xf32>,
    return
  }
  func.func @transform_0(%arg0: i32, %arg1: i32) -> (i32, i32, i32) {
    %c0_i32 = arith.constant 0 : i32
    %c0_i32_0 = arith.constant 0 : i32
    return %arg0, %c0_i32, %arg1 : i32, i32, i32
  }
  func.func @transform_1(%arg0: i32, %arg1: i32) -> (i32, i32) {
    %c0_i32 = arith.constant 0 : i32
    %c0_i32_0 = arith.constant 0 : i32
    %c0_i32_1 = arith.constant 0 : i32
    return %c0_i32, %c0_i32_0 : i32, i32
  }
  func.func @transform_2(%arg0: i32, %arg1: i32) -> (i32, i32) {
    %c0_i32 = arith.constant 0 : i32
    %c0_i32_0 = arith.constant 0 : i32
    %c0_i32_1 = arith.constant 0 : i32
    return %c0_i32, %c0_i32_0 : i32, i32
  }
  func.func @transform_3(%arg0: i32, %arg1: i32) -> (i32, i32, i32) {
    %c0_i32 = arith.constant 0 : i32
    %c0_i32_0 = arith.constant 0 : i32
    return %arg0, %c0_i32, %arg1 : i32, i32, i32
  }
}

</mosaic_0001>

<llo_original>
// kernel: tpu_custom_call.1
$region0: #{tpu_custom_call.1}
  #allocation0 [shape = 'u32[]', space=smem, size = 0x4, offset = 0x4, fixed_abs, tag = 'smem constant byte address 0x4 - core index']
  #allocation1 [shape = 'u32[144,128]{1,0:T(1,128)}', space=vmem, size = 0x12000, scoped, tag = 'internal scratch']
  %s0 = inlined_call_operand.hbm [shape: f32[2,8,128], index: 0, kind: input, shape index: {}, may-alias: {0,3}]
  %s1 = inlined_call_operand.vmem [shape: f32[8,8], index: 1, kind: input, shape index: {}]
  %s2 = inlined_call_operand.vmem [shape: f32[8,1], index: 2, kind: input, shape index: {}]
  %s3 = inlined_call_operand.hbm [shape: f32[2,8,128], index: 3, kind: output, shape index: {}, may-alias: {0,3}]
  %s4 = sld [smem:[#allocation0]]
  $region49: #{tpu_custom_call.1} parent=0
    _
  %s6 = ssub.s32 1, %s4
  %s7 = scalar_select 0, %s6, %s4
  $region1: #{tpu_custom_call.1} parent=0
    #allocation2 [shape = 'u8[8192]{0}', space=vmem, size = 0x2000, scoped, tag = 'input window, operand 0']
    #allocation3 [shape = 's32[2]{0}', space=sflag, size = 0x8, scoped, tag = 'scoped memory for tpu_custom_call.1']
    #allocation4 [shape = 's32[2]{0}', space=sflag, size = 0x8, scoped, tag = 'scoped memory for tpu_custom_call.1']
    #allocation5 [shape = 'u8[8192]{0}', space=vmem, size = 0x2000, scoped, tag = 'output window, operand 0']
    %8 = vsyncpa [#allocation3], 0
    %s9 = scalar_lea.sflag [#allocation3], 1
    %10 = vsyncpa %s9, 0
    %11 = vsyncpa [#allocation4], 0
    %s12 = scalar_lea.sflag [#allocation4], 1
    %13 = vsyncpa %s12, 0
    loop: start=0, step=1, limit=4
    $region2: #{tpu_custom_call.1} parent=1 // loop_pre_header
      _
    $region3: #{tpu_custom_call.1} parent=1 // loop_header
      %s15 = sphi 0, %s19
      %p16 = scmp.ge.s32.totalorder %s15, 4
      %s22 = sphi 0, %s34
      %s23 = sphi 0, %s30
      %s24 = sphi 0, %s22
      %s25 = sphi 0, %s23
      %s26 = sphi 0, %s24
      %s27 = sphi 0, %s25
      %s39 = sphi 0, %s41
      %s42 = sphi 0, %s39
      %s43 = sphi 0, %s42
      %s59 = sphi 0, %s43
      %s63 = sphi 0, %s63
      %s65 = sphi 0, %s63
      %s66 = sphi 0, %s65
      %s80 = sphi 0, %s66
      %s84 = sphi 0, %s84
      %s86 = sphi 0, %s84
      %s87 = sphi 0, %s86
      %s101 = sphi 0, %s87
      %s109 = sphi 0, %s111
      %s112 = sphi 0, %s109
      %s113 = sphi 0, %s112
      %s129 = sphi 0, %s113
    $region4: #{tpu_custom_call.1} parent=1 // loop_header_branch
      %18 = sbr.rel (%p16) target = $region8
    $region5: #{tpu_custom_call.1} parent=1 // loop_body
      %s20 = ssub.s32 %s15, 1
      %s21 = ssub.s32 %s15, 2
      %s28 = sadd.s32 1, %s23
      %p29 = scmp.ge.s32.totalorder %s28, 1
      %s30 = scalar_select %p29, 0, %s28
      %s31 = sadd.s32 1, %s22
      %s32 = scalar_select %p29, %s31, %s22
      %p33 = scmp.ge.s32.totalorder %s32, 2
      %s34 = scalar_select %p33, 0, %s32
      %s35 = ssub.s32 %s22, %s34
      %s36 = ssub.s32 %s23, %s30
      %s37 = sor.u32 %s35, %s36
      %p38 = scmp.eq.s32.totalorder %s37, 0
      %s40 = sadd.s32 %s39, 1
      %s41 = scalar_select %p38, %s39, %s40
      %p44 = pneg %p38
      %p45 = scmp.eq.s32.totalorder %s15, 1
      %p46 = por %p44, %p45
      %p47 = scmp.ne.s32.totalorder %s39, %s42
      %p48 = scmp.eq.s32.totalorder %s15, 0
      %p49 = por %p47, %p48
      %p50 = scmp.ne.s32.totalorder %s39, %s42
      %p51 = scmp.eq.s32.totalorder %s20, 1
      %p52 = por %p50, %p51
      %p53 = scmp.ne.s32.totalorder %s42, %s43
      %p54 = scmp.eq.s32.totalorder %s20, 0
      %p55 = por %p53, %p54
      %p56 = scmp.ne.s32.totalorder %s42, %s43
      %p57 = scmp.eq.s32.totalorder %s21, 1
      %p58 = por %p56, %p57
      %p60 = scmp.ne.s32.totalorder %s43, %s59
      %p61 = scmp.eq.s32.totalorder %s21, 0
      %p62 = por %p60, %p61
      %s64 = sadd.s32 %s63, 1
      %p67 = scmp.eq.s32.totalorder %s15, 1
      %p68 = scmp.ne.s32.totalorder %s63, %s65
      %p69 = scmp.eq.s32.totalorder %s15, 0
      %p70 = por %p68, %p69
      %p71 = scmp.ne.s32.totalorder %s63, %s65
      %p72 = scmp.eq.s32.totalorder %s20, 1
      %p73 = por %p71, %p72
      %p74 = scmp.ne.s32.totalorder %s65, %s66
      %p75 = scmp.eq.s32.totalorder %s20, 0
      %p76 = por %p74, %p75
      %p77 = scmp.ne.s32.totalorder %s65, %s66
      %p78 = scmp.eq.s32.totalorder %s21, 1
      %p79 = por %p77, %p78
      %p81 = scmp.ne.s32.totalorder %s66, %s80
      %p82 = scmp.eq.s32.totalorder %s21, 0
      %p83 = por %p81, %p82
      %s85 = sadd.s32 %s84, 1
      %p88 = scmp.eq.s32.totalorder %s15, 1
      %p89 = scmp.ne.s32.totalorder %s84, %s86
      %p90 = scmp.eq.s32.totalorder %s15, 0
      %p91 = por %p89, %p90
      %p92 = scmp.ne.s32.totalorder %s84, %s86
      %p93 = scmp.eq.s32.totalorder %s20, 1
      %p94 = por %p92, %p93
      %p95 = scmp.ne.s32.totalorder %s86, %s87
      %p96 = scmp.eq.s32.totalorder %s20, 0
      %p97 = por %p95, %p96
      %p98 = scmp.ne.s32.totalorder %s86, %s87
      %p99 = scmp.eq.s32.totalorder %s21, 1
      %p100 = por %p98, %p99
      %p102 = scmp.ne.s32.totalorder %s87, %s101
      %p103 = scmp.eq.s32.totalorder %s21, 0
      %p104 = por %p102, %p103
      %s105 = ssub.s32 %s22, %s34
      %s106 = ssub.s32 %s23, %s30
      %s107 = sor.u32 %s105, %s106
      %p108 = scmp.eq.s32.totalorder %s107, 0
      %s110 = sadd.s32 %s109, 1
      %s111 = scalar_select %p108, %s109, %s110
      %p114 = pneg %p108
      %p115 = scmp.eq.s32.totalorder %s15, 1
      %p116 = por %p114, %p115
      %p117 = scmp.ne.s32.totalorder %s109, %s112
      %p118 = scmp.eq.s32.totalorder %s15, 0
      %p119 = por %p117, %p118
      %p120 = scmp.ne.s32.totalorder %s109, %s112
      %p121 = scmp.eq.s32.totalorder %s20, 1
      %p122 = por %p120, %p121
      %p123 = scmp.ne.s32.totalorder %s112, %s113
      %p124 = scmp.eq.s32.totalorder %s20, 0
      %p125 = por %p123, %p124
      %p126 = scmp.ne.s32.totalorder %s112, %s113
      %p127 = scmp.eq.s32.totalorder %s21, 1
      %p128 = por %p126, %p127
      %p130 = scmp.ne.s32.totalorder %s113, %s129
      %p131 = scmp.eq.s32.totalorder %s21, 0
      %p132 = por %p130, %p131
      %p133 = scmp.le.s32.totalorder 1, %s15
      %p134 = scmp.lt.s32.totalorder %s15, 3
      %p135 = pnand %p133, %p134
      %p136 = pneg %p135
      // Predicated region
      $region9: #{tpu_custom_call.1} parent=5 // pred_check
        _
      $region10: #{tpu_custom_call.1} parent=5 // pred_check_branch
        %138 = sbr.rel (%p135) target = $region12
      $region11: #{tpu_custom_call.1} parent=5 // pred_region
        %s139 = ssub.s32 %s15, 1
        // Predicated region
        $region13: #{tpu_custom_call.1} parent=11 // pred_check
          %p140 = pneg %p76
        $region14: #{tpu_custom_call.1} parent=11 // pred_check_branch
          %142 = sbr.rel (%p140) target = $region16
        $region15: #{tpu_custom_call.1} parent=11 // pred_region
          _
        $region16: #{tpu_custom_call.1} parent=11 // pred_fallthru
          _
        // Predicated region
        $region17: #{tpu_custom_call.1} parent=11 // pred_check
          %p143 = pneg %p97
        $region18: #{tpu_custom_call.1} parent=11 // pred_check_branch
          %145 = sbr.rel (%p143) target = $region20
        $region19: #{tpu_custom_call.1} parent=11 // pred_region
          _
        $region20: #{tpu_custom_call.1} parent=11 // pred_fallthru
          _
      $region12: #{tpu_custom_call.1} parent=5 // pred_fallthru
        _
      %p146 = scmp.lt.s32.totalorder %s15, 2
      // Predicated region
      $region21: #{tpu_custom_call.1} parent=5 // pred_check
        %p147 = pneg %p146
      $region22: #{tpu_custom_call.1} parent=5 // pred_check_branch
        %149 = sbr.rel (%p147) target = $region24
      $region23: #{tpu_custom_call.1} parent=5 // pred_region
        // Predicated region
        $region25: #{tpu_custom_call.1} parent=23 // pred_check
          %p150 = pneg %p49
        $region26: #{tpu_custom_call.1} parent=23 // pred_check_branch
          %152 = sbr.rel (%p150) target = $region28
        $region27: #{tpu_custom_call.1} parent=23 // pred_region
          %s153 = sand.u32 %s39, 1
          %s154 = scalar_lea.sflag [#allocation3], %s153
          %s155 = sand.u32 %s39, 1
          %s156 = smul.addr %s155, 8
          %s157 = scalar_lea.vmem [#allocation2], %s156
          %s159 = ssub.s32 128, 128
          %160 = vsyncadd %s154, %s159
          %s161 = sadd.s32 %s23, %s22
          %s162 = smul.addr %s161, 128
          %s163 = scalar_lea.hbm %s0, %s162
          %s165 = sshll.u32 %s157, 4
          %s166 = int_to_ptr.vmem [resolvable:$true] %s165
          %168 = dma.hbm_to_vmem [thread:$0]  %s163, 128, %s166, %s154
        $region28: #{tpu_custom_call.1} parent=23 // pred_fallthru
          _
      $region24: #{tpu_custom_call.1} parent=5 // pred_fallthru
        _
      %p169 = scmp.le.s32.totalorder 1, %s15
      %p170 = scmp.lt.s32.totalorder %s15, 3
      %p171 = pnand %p169, %p170
      %p172 = pneg %p171
      // Predicated region
      $region29: #{tpu_custom_call.1} parent=5 // pred_check
        _
      $region30: #{tpu_custom_call.1} parent=5 // pred_check_branch
        %174 = sbr.rel (%p171) target = $region32
      $region31: #{tpu_custom_call.1} parent=5 // pred_region
        %s175 = ssub.s32 %s15, 1
        %s176 = sand.u32 %s42, 1
        %s177 = scalar_lea.sflag [#allocation3], %s176
        %s178 = sand.u32 %s42, 1
        %s179 = smul.addr %s178, 8
        %s180 = scalar_lea.vmem [#allocation2], %s179
        // Predicated region
        $region33: #{tpu_custom_call.1} parent=31 // pred_check
          %p181 = pneg %p55
        $region34: #{tpu_custom_call.1} parent=31 // pred_check_branch
          %183 = sbr.rel (%p181) target = $region36
        $region35: #{tpu_custom_call.1} parent=31 // pred_region
          %184 = dma.done %s177, 128
        $region36: #{tpu_custom_call.1} parent=31 // pred_fallthru
          _
        %s185 = sand.u32 %s42, 1
        %s186 = scalar_lea.sflag [#allocation3], %s185
        %s187 = sand.u32 %s42, 1
        %s188 = smul.addr %s187, 8
        %s189 = scalar_lea.vmem [#allocation2], %s188
        %p190 = pneg %p55
        %p191 = pneg %p52
        %p192 = pneg %p76
        %p193 = pneg %p73
        %p194 = pneg %p97
        %p195 = pneg %p94
        %p196 = pneg %p125
        %p197 = pneg %p122
        %s198 = sand.u32 %s112, 1
        %s199 = scalar_lea.sflag [#allocation4], %s198
        %s200 = sand.u32 %s112, 1
        %s201 = smul.addr %s200, 8
        %s202 = scalar_lea.vmem [#allocation5], %s201
        %v203 = vld [vmem:[%s1] sm:$0xff]
        %v204 = vld [vmem:[%s2] sm:$0xff]
        %v205 = vld [vmem:[%s180] sm:$0xff]
        %207 = vset.pattern.permute.xlu0 0
        %208 = vperm.xlu0 %207, %v204
        %v209 = vpop.permute.xlu0 %208
        %vm211 = vcmask 64512
        %v213 = vsel %vm211, %v203, 0
        %215 = vmatprep.subr.mxu0 0.0
        %216 = vmatpush1.msra.mxu0 %v205
        %217 = vmatprep.subr.mxu0 0.0
        %218 = vmatpush1.msra.mxu0 0.0
        %219 = vmatprep.subr.mxu0 0.0
        %220 = vmatpush1.msra.mxu0 0.0
        %221 = vmatprep.subr.mxu0 0.0
        %222 = vmatpush1.msra.mxu0 0.0
        %223 = vmatprep.subr.mxu0 0.0
        %224 = vmatpush1.msra.mxu0 0.0
        %225 = vmatprep.subr.mxu0 0.0
        %226 = vmatpush1.msra.mxu0 0.0
        %227 = vmatprep.subr.mxu0 0.0
        %228 = vmatpush1.msra.mxu0 0.0
        %229 = vmatprep.subr.mxu0 0.0
        %230 = vmatpush1.msra.mxu0 0.0
        %231 = vmatprep.subr.mxu0 0.0
        %232 = vmatpush1.msra.mxu0 0.0
        %233 = vmatprep.subr.mxu0 0.0
        %234 = vmatpush1.msra.mxu0 0.0
        %235 = vmatprep.subr.mxu0 0.0
        %236 = vmatpush1.msra.mxu0 0.0
        %237 = vmatprep.subr.mxu0 0.0
        %238 = vmatpush1.msra.mxu0 0.0
        %239 = vmatprep.subr.mxu0 0.0
        %240 = vmatpush1.msra.mxu0 0.0
        %241 = vmatprep.subr.mxu0 0.0
        %242 = vmatpush1.msra.mxu0 0.0
        %243 = vmatprep.subr.mxu0 0.0
        %244 = vmatpush1.msra.mxu0 0.0
        %245 = vmatprep.subr.mxu0 0.0
        %246 = vmatpush1.msra.mxu0 0.0
        %247 = vmatprep.subr.mxu0 0.0
        %248 = vmatpush1.msra.mxu0 0.0
        %249 = vmatprep.subr.mxu0 0.0
        %250 = vmatpush1.msra.mxu0 0.0
        %251 = vmatprep.subr.mxu0 0.0
        %252 = vmatpush1.msra.mxu0 0.0
        %253 = vmatprep.subr.mxu0 0.0
        %254 = vmatpush1.msra.mxu0 0.0
        %255 = vmatprep.subr.mxu0 0.0
        %256 = vmatpush1.msra.mxu0 0.0
        %257 = vmatprep.subr.mxu0 0.0
        %258 = vmatpush1.msra.mxu0 0.0
        %259 = vmatprep.subr.mxu0 0.0
        %260 = vmatpush1.msra.mxu0 0.0
        %261 = vmatprep.subr.mxu0 0.0
        %262 = vmatpush1.msra.mxu0 0.0
        %263 = vmatprep.subr.mxu0 0.0
        %264 = vmatpush1.msra.mxu0 0.0
        %265 = vmatprep.subr.mxu0 0.0
        %266 = vmatpush1.msra.mxu0 0.0
        %267 = vmatprep.subr.mxu0 0.0
        %268 = vmatpush1.msra.mxu0 0.0
        %269 = vmatprep.subr.mxu0 0.0
        %270 = vmatpush1.msra.mxu0 0.0
        %271 = vmatprep.subr.mxu0 0.0
        %272 = vmatpush1.msra.mxu0 0.0
        %273 = vmatprep.subr.mxu0 0.0
        %274 = vmatpush1.msra.mxu0 0.0
        %275 = vmatprep.subr.mxu0 0.0
        %276 = vmatpush1.msra.mxu0 0.0
        %277 = vmatprep.subr.mxu0 0.0
        %278 = vmatpush1.msra.mxu0 0.0
        %279 = vmatprep.mubr.f32.mxu0 0.0
        %280 = vmatmul.mubr.f32.gmra.mrb[0].mxu0 %v213
        %v281 = vpop.f32.mrb[0].mxu0
        %v282 = vadd.f32 %v209, %v281
        %v283 = vpop.f32.mrb[0].mxu0
        %284 = vdwg.mxu0
        %v285 = vadd.f32 %v282, %v205
        %286 = vst [vmem:[%s202] sm:$0xff] %v285
        %s287 = sand.u32 %s112, 1
        %s288 = scalar_lea.sflag [#allocation4], %s287
        %s289 = sand.u32 %s112, 1
        %s290 = smul.addr %s289, 8
        %s291 = scalar_lea.vmem [#allocation5], %s290
        // Predicated region
        $region37: #{tpu_custom_call.1} parent=31 // pred_check
          %p292 = pneg %p122
        $region38: #{tpu_custom_call.1} parent=31 // pred_check_branch
          %294 = sbr.rel (%p292) target = $region40
        $region39: #{tpu_custom_call.1} parent=31 // pred_region
          %s296 = ssub.s32 128, 128
          %297 = vsyncadd %s288, %s296
          %s298 = sadd.s32 %s25, %s24
          %s299 = smul.addr %s298, 128
          %s300 = scalar_lea.hbm %s3, %s299
          %s302 = sshll.u32 %s291, 4
          %s303 = int_to_ptr.vmem [resolvable:$true] %s302
          %305 = dma.vmem_to_hbm [thread:$0]  %s303, 128, %s300, %s288
        $region40: #{tpu_custom_call.1} parent=31 // pred_fallthru
          _
      $region32: #{tpu_custom_call.1} parent=5 // pred_fallthru
        _
      %p306 = scmp.le.s32.totalorder 2, %s15
      // Predicated region
      $region41: #{tpu_custom_call.1} parent=5 // pred_check
        %p307 = pneg %p306
      $region42: #{tpu_custom_call.1} parent=5 // pred_check_branch
        %309 = sbr.rel (%p307) target = $region44
      $region43: #{tpu_custom_call.1} parent=5 // pred_region
        %s310 = ssub.s32 %s15, 2
        // Predicated region
        $region45: #{tpu_custom_call.1} parent=43 // pred_check
          %p311 = pneg %p128
        $region46: #{tpu_custom_call.1} parent=43 // pred_check_branch
          %313 = sbr.rel (%p311) target = $region48
        $region47: #{tpu_custom_call.1} parent=43 // pred_region
          %s314 = sand.u32 %s113, 1
          %s315 = scalar_lea.sflag [#allocation4], %s314
          %s316 = sand.u32 %s113, 1
          %s317 = smul.addr %s316, 8
          %s318 = scalar_lea.vmem [#allocation5], %s317
          %319 = dma.done %s315, 128
        $region48: #{tpu_custom_call.1} parent=43 // pred_fallthru
          _
      $region44: #{tpu_custom_call.1} parent=5 // pred_fallthru
        _
    $region6: #{tpu_custom_call.1} parent=1 // loop_footer
      %s19 = sadd.s32 1, %s15
    $region7: #{tpu_custom_call.1} parent=1 // loop_footer_branch
      %14 = sbr.rel target = $region3
    $region8: #{tpu_custom_call.1} parent=1 // loop_exit
      _
    %320 = vsyncpa [#allocation3], 1
    %s321 = scalar_lea.sflag [#allocation3], 1
    %322 = vsyncpa %s321, 1
    %323 = vsyncpa [#allocation4], 1
    %s324 = scalar_lea.sflag [#allocation4], 1
    %325 = vsyncpa %s324, 1

</llo_original>
